<compile_context>
chip_gen: v7x
topology: tpu7x:2x2x1
jax: 0.10.0
libtpu: 0.0.40
codegen_flags: <defaults>
</compile_context>

<pallas_src>
import functools

import jax
import jax.numpy as jnp
from jax import lax
from jax.experimental import pallas as pl
from jax.experimental.pallas import tpu as pltpu


# ----------------------------------------------------------------------------
# Pallas kernel: fused L2-normalize + query @ ref.T (+ optional power)
# ----------------------------------------------------------------------------
def _dot_sim_kernel(q_ref, r_ref, o_ref, acc_ref, qn_ref, rn_ref, *, power, eps):
    k = pl.program_id(2)

    @pl.when(k == 0)
    def _():
        acc_ref[...] = jnp.zeros_like(acc_ref)
        qn_ref[...] = jnp.zeros_like(qn_ref)
        rn_ref[...] = jnp.zeros_like(rn_ref)

    q = q_ref[...]                      # (tm, tk) in input dtype (MXU-native)
    r = r_ref[...]                      # (tn, tk)

    # Raw dot-product partial: q @ r.T on the MXU, f32 accumulation.
    acc_ref[...] += lax.dot_general(
        q, r, (((1,), (1,)), ((), ())), preferred_element_type=jnp.float32)

    # Squared-L2-norm partials (always f32, independent of input dtype).
    qf = q.astype(jnp.float32)
    rf = r.astype(jnp.float32)
    qn_ref[...] += jnp.sum(qf * qf, axis=1, keepdims=True)          # (tm, 1)
    ones_row = jnp.ones((1, rf.shape[1]), jnp.float32)
    rn_ref[...] += lax.dot_general(                                  # (1, tn)
        ones_row, rf * rf, (((1,), (1,)), ((), ())),
        preferred_element_type=jnp.float32)

    @pl.when(k == pl.num_programs(2) - 1)
    def _():
        q_norm = jnp.maximum(jnp.sqrt(qn_ref[...]), eps)             # (tm, 1)
        r_norm = jnp.maximum(jnp.sqrt(rn_ref[...]), eps)             # (1, tn)
        mat = acc_ref[...] / (q_norm * r_norm)
        if power != 1:                                               # static
            mat = mat ** power
        o_ref[...] = mat.astype(o_ref.dtype)


def _round_up(x, mult):
    return ((x + mult - 1) // mult) * mult


def dot_product_similarity_pallas(query_emb, ref_emb=None, *, power=1, eps=1e-12):
    if ref_emb is None:
        ref_emb = query_emb
    m, d = query_emb.shape
    n, d2 = ref_emb.shape
    assert d == d2, "query/ref embedding dims must match"

    out_dtype = jnp.result_type(query_emb.dtype, ref_emb.dtype)

    # Tile selection: lane/sublane aligned, capped for VMEM headroom (v7x-safe).
    tm = 256 if m >= 256 else _round_up(m, 8)
    tn = 256 if n >= 256 else _round_up(n, 8)
    tk = 512 if d >= 512 else _round_up(d, 128)

    mp, np_, kp = _round_up(m, tm), _round_up(n, tn), _round_up(d, tk)

    q, r = query_emb, ref_emb
    if (mp, kp) != (m, d):
        q = jnp.pad(q, ((0, mp - m), (0, kp - d)))   # zero rows/cols: norm-safe
    if (np_, kp) != (n, d):
        r = jnp.pad(r, ((0, np_ - n), (0, kp - d)))

    kernel = functools.partial(_dot_sim_kernel, power=power, eps=eps)

    out = pl.pallas_call(
        kernel,
        out_shape=jax.ShapeDtypeStruct((mp, np_), out_dtype),
        grid_spec=pltpu.PrefetchScalarGridSpec(
            num_scalar_prefetch=0,
            grid=(mp // tm, np_ // tn, kp // tk),
            in_specs=[
                pl.BlockSpec((tm, tk), lambda i, j, k: (i, k)),   # query tile
                pl.BlockSpec((tn, tk), lambda i, j, k: (j, k)),   # ref tile
            ],
            out_specs=pl.BlockSpec((tm, tn), lambda i, j, k: (i, j)),
            scratch_shapes=[
                pltpu.VMEM((tm, tn), jnp.float32),   # matmul accumulator
                pltpu.VMEM((tm, 1), jnp.float32),    # query sq-norm partials
                pltpu.VMEM((1, tn), jnp.float32),    # ref sq-norm partials
            ],
        ),
        compiler_params=pltpu.CompilerParams(
            dimension_semantics=("parallel", "parallel", "arbitrary")),
    )(q, r)
    return out[:m, :n]


# ----------------------------------------------------------------------------
# Module wrapper mirroring the PyTorch forward-pass semantics
# ----------------------------------------------------------------------------
class DotProductSimilarity:
    def __init__(self, is_inverted=True, power=1):
        self.power = power
        self.is_inverted = is_inverted   # stored for parity; unused in forward

    # API-parity helpers (not on the fused forward path)
    def normalize(self, embeddings, p=2, axis=1, eps=1e-12):
        # TODO(synk): only p=2 matches the fused kernel; other p handled in jnp.
        nrm = jnp.sum(jnp.abs(embeddings) ** p, axis=axis, keepdims=True) ** (1.0 / p)
        return embeddings / jnp.maximum(nrm, eps)

    def compute_mat(self, query_emb, ref_emb):
        return jnp.matmul(query_emb, ref_emb.T)

    def pairwise_distance(self, query_emb, ref_emb):
        return jnp.sum(query_emb * ref_emb, axis=1)

    def __call__(self, query_emb, ref_emb=None):
        return self.forward(query_emb, ref_emb)

    def forward(self, query_emb, ref_emb=None):
        n_ref = query_emb.shape[0] if ref_emb is None else ref_emb.shape[0]
        mat = dot_product_similarity_pallas(query_emb, ref_emb, power=self.power)
        assert mat.shape == (query_emb.shape[0], n_ref)
        return mat


# ----------------------------------------------------------------------------
# Self-test
# ----------------------------------------------------------------------------
def _reference(q, r, power):
    qn = q / jnp.maximum(jnp.linalg.norm(q, axis=1, keepdims=True), 1e-12)
    rn = r / jnp.maximum(jnp.linalg.norm(r, axis=1, keepdims=True), 1e-12)
    mat = jnp.matmul(qn, rn.T)
    return mat if power == 1 else mat ** power


if __name__ == "__main__":
    key = jax.random.PRNGKey(0)
    kq, kr = jax.random.split(key)

    batch_q, batch_r, hidden = 2, 4, 32
    query = jax.random.normal(kq, (batch_q, hidden), dtype=jnp.float32)
    ref = jax.random.normal(kr, (batch_r, hidden), dtype=jnp.float32)

    # Path 1: query vs ref
    sim = DotProductSimilarity()
    out = jax.block_until_ready(sim(query, ref))
    assert out.shape == (batch_q, batch_r)
    assert jnp.allclose(out, _reference(query, ref, 1), atol=1e-5, rtol=1e-5)

    # Path 2: ref_emb=None -> self-similarity
    out_self = jax.block_until_ready(sim(query))
    assert out_self.shape == (batch_q, batch_q)
    assert jnp.allclose(out_self, _reference(query, query, 1), atol=1e-5, rtol=1e-5)

    # Path 3: power != 1
    sim2 = DotProductSimilarity(power=2)
    out_p2 = jax.block_until_ready(sim2(query, ref))
    assert jnp.allclose(out_p2, _reference(query, ref, 2), atol=1e-5, rtol=1e-5)

    print("KERNEL_OK")
</pallas_src>

<mosaic_0001>
module attributes {stable_mosaic.version = 11 : i64} {
  func.func @_dot_sim_kernel(%arg0: i32, %arg1: i32, %arg2: i32, %arg3: memref<8x128xf32, #tpu.memory_space<vmem>>, %arg4: memref<8x128xf32, #tpu.memory_space<vmem>>, %arg5: memref<8x8xf32, #tpu.memory_space<vmem>>, %arg6: memref<8x8xf32, #tpu.memory_space<vmem>>, %arg7: memref<8x1xf32, #tpu.memory_space<vmem>>, %arg8: memref<1x8xf32, #tpu.memory_space<vmem>>) attributes {dimension_semantics = [#tpu.dimension_semantics<parallel>, #tpu.dimension_semantics<parallel>, #tpu.dimension_semantics<arbitrary>], iteration_bounds = array<i64: 1, 1, 1>, scalar_prefetch = 0 : i64, scratch_operands = 3 : i64, tpu.core_type = #tpu.core_type<tc>, window_params = [{transform_indices = @transform_0, window_bounds = array<i64: 8, 128>}, {transform_indices = @transform_1, window_bounds = array<i64: 8, 128>}, {transform_indices = @transform_2, window_bounds = array<i64: 8, 8>}]} {
    %c0_i32 = arith.constant 0 : i32
    %0 = arith.cmpi eq, %arg2, %c0_i32 : i32
    %1 = arith.extui %0 : i1 to i32
    %c0_i32_0 = arith.constant 0 : i32
    %2 = arith.cmpi ne, %1, %c0_i32_0 : i32
    scf.if %2 {
      %cst_21 = arith.constant 0.000000e+00 : f32
      %24 = vector.broadcast %cst_21 : f32 to vector<8x8xf32>
      %c0_22 = arith.constant 0 : index
      %c0_23 = arith.constant 0 : index
      %25 = vector.load %arg6[%c0_22, %c0_23] : memref<8x8xf32, #tpu.memory_space<vmem>>, vector<8x8xf32>
      tpu.vector_store %arg6[%c0_22, %c0_23], %24 {strides = array<i32>} : memref<8x8xf32, #tpu.memory_space<vmem>>, vector<8x8xf32>,
      %cst_24 = arith.constant 0.000000e+00 : f32
      %26 = vector.broadcast %cst_24 : f32 to vector<8x1xf32>
      %c0_25 = arith.constant 0 : index
      %c0_26 = arith.constant 0 : index
      %27 = vector.load %arg7[%c0_25, %c0_26] : memref<8x1xf32, #tpu.memory_space<vmem>>, vector<8x1xf32>
      tpu.vector_store %arg7[%c0_25, %c0_26], %26 {strides = array<i32>} : memref<8x1xf32, #tpu.memory_space<vmem>>, vector<8x1xf32>,
      %cst_27 = arith.constant 0.000000e+00 : f32
      %28 = vector.broadcast %cst_27 : f32 to vector<1x8xf32>
      %c0_28 = arith.constant 0 : index
      %c0_29 = arith.constant 0 : index
      %29 = vector.load %arg8[%c0_28, %c0_29] : memref<1x8xf32, #tpu.memory_space<vmem>>, vector<1x8xf32>
      tpu.vector_store %arg8[%c0_28, %c0_29], %28 {strides = array<i32>} : memref<1x8xf32, #tpu.memory_space<vmem>>, vector<1x8xf32>,
    } else {
    }
    %c0 = arith.constant 0 : index
    %c0_1 = arith.constant 0 : index
    %3 = vector.load %arg3[%c0, %c0_1] : memref<8x128xf32, #tpu.memory_space<vmem>>, vector<8x128xf32>
    %c0_2 = arith.constant 0 : index
    %c0_3 = arith.constant 0 : index
    %4 = vector.load %arg4[%c0_2, %c0_3] : memref<8x128xf32, #tpu.memory_space<vmem>>, vector<8x128xf32>
    %c0_4 = arith.constant 0 : index
    %c0_5 = arith.constant 0 : index
    %5 = vector.load %arg6[%c0_4, %c0_5] : memref<8x8xf32, #tpu.memory_space<vmem>>, vector<8x8xf32>
    %cst = arith.constant dense<0.000000e+00> : vector<8x8xf32>
    %6 = tpu.matmul %3, %4, %cst {dimension_numbers = #tpu.dot_dimension_numbers<[1], [1], [0], [0], [0, 0, 1, 0], [], []>} : vector<8x128xf32>, vector<8x128xf32>, vector<8x8xf32> -> vector<8x8xf32>
    %7 = arith.addf %5, %6 : vector<8x8xf32>
    %c0_6 = arith.constant 0 : index
    %c0_7 = arith.constant 0 : index
    %8 = vector.load %arg6[%c0_6, %c0_7] : memref<8x8xf32, #tpu.memory_space<vmem>>, vector<8x8xf32>
    tpu.vector_store %arg6[%c0_6, %c0_7], %7 {strides = array<i32>} : memref<8x8xf32, #tpu.memory_space<vmem>>, vector<8x8xf32>,
    %c0_8 = arith.constant 0 : index
    %c0_9 = arith.constant 0 : index
    %9 = vector.load %arg7[%c0_8, %c0_9] : memref<8x1xf32, #tpu.memory_space<vmem>>, vector<8x1xf32>
    %10 = arith.mulf %3, %3 : vector<8x128xf32>
    %cst_10 = arith.constant dense<0.000000e+00> : vector<8xf32>
    %11 = vector.multi_reduction <add>, %10, %cst_10 [1] : vector<8x128xf32> to vector<8xf32>
    %12 = vector.shape_cast %11 : vector<8xf32> to vector<8x1xf32>
    %13 = arith.addf %9, %12 : vector<8x1xf32>
    %c0_11 = arith.constant 0 : index
    %c0_12 = arith.constant 0 : index
    %14 = vector.load %arg7[%c0_11, %c0_12] : memref<8x1xf32, #tpu.memory_space<vmem>>, vector<8x1xf32>
    tpu.vector_store %arg7[%c0_11, %c0_12], %13 {strides = array<i32>} : memref<8x1xf32, #tpu.memory_space<vmem>>, vector<8x1xf32>,
    %cst_13 = arith.constant 1.000000e+00 : f32
    %15 = vector.broadcast %cst_13 : f32 to vector<1x128xf32>
    %c0_14 = arith.constant 0 : index
    %c0_15 = arith.constant 0 : index
    %16 = vector.load %arg8[%c0_14, %c0_15] : memref<1x8xf32, #tpu.memory_space<vmem>>, vector<1x8xf32>
    %17 = arith.mulf %4, %4 : vector<8x128xf32>
    %cst_16 = arith.constant dense<0.000000e+00> : vector<1x8xf32>
    %18 = tpu.matmul %15, %17, %cst_16 {dimension_numbers = #tpu.dot_dimension_numbers<[1], [1], [0], [0], [0, 0, 1, 0], [], []>} : vector<1x128xf32>, vector<8x128xf32>, vector<1x8xf32> -> vector<1x8xf32>
    %19 = arith.addf %16, %18 : vector<1x8xf32>
    %c0_17 = arith.constant 0 : index
    %c0_18 = arith.constant 0 : index
    %20 = vector.load %arg8[%c0_17, %c0_18] : memref<1x8xf32, #tpu.memory_space<vmem>>, vector<1x8xf32>
    tpu.vector_store %arg8[%c0_17, %c0_18], %19 {strides = array<i32>} : memref<1x8xf32, #tpu.memory_space<vmem>>, vector<1x8xf32>,
    %c0_i32_19 = arith.constant 0 : i32
    %21 = arith.cmpi eq, %arg2, %c0_i32_19 : i32
    %22 = arith.extui %21 : i1 to i32
    %c0_i32_20 = arith.constant 0 : i32
    %23 = arith.cmpi ne, %22, %c0_i32_20 : i32
    scf.if %23 {
      %c0_21 = arith.constant 0 : index
      %c0_22 = arith.constant 0 : index
      %24 = vector.load %arg7[%c0_21, %c0_22] : memref<8x1xf32, #tpu.memory_space<vmem>>, vector<8x1xf32>
      %25 = math.sqrt %24 : vector<8x1xf32>
      %cst_23 = arith.constant 9.99999996E-13 : f32
      %26 = vector.broadcast %cst_23 : f32 to vector<8x1xf32>
      %27 = arith.maximumf %25, %26 : vector<8x1xf32>
      %c0_24 = arith.constant 0 : index
      %c0_25 = arith.constant 0 : index
      %28 = vector.load %arg8[%c0_24, %c0_25] : memref<1x8xf32, #tpu.memory_space<vmem>>, vector<1x8xf32>
      %29 = math.sqrt %28 : vector<1x8xf32>
      %cst_26 = arith.constant 9.99999996E-13 : f32
      %30 = vector.broadcast %cst_26 : f32 to vector<1x8xf32>
      %31 = arith.maximumf %29, %30 : vector<1x8xf32>
      %c0_27 = arith.constant 0 : index
      %c0_28 = arith.constant 0 : index
      %32 = vector.load %arg6[%c0_27, %c0_28] : memref<8x8xf32, #tpu.memory_space<vmem>>, vector<8x8xf32>
      %33 = vector.broadcast %27 : vector<8x1xf32> to vector<8x8xf32>
      %34 = vector.broadcast %31 : vector<1x8xf32> to vector<8x8xf32>
      %35 = arith.mulf %33, %34 : vector<8x8xf32>
      %36 = arith.divf %32, %35 : vector<8x8xf32>
      %c0_29 = arith.constant 0 : index
      %c0_30 = arith.constant 0 : index
      %37 = vector.load %arg5[%c0_29, %c0_30] : memref<8x8xf32, #tpu.memory_space<vmem>>, vector<8x8xf32>
      tpu.vector_store %arg5[%c0_29, %c0_30], %36 {strides = array<i32>} : memref<8x8xf32, #tpu.memory_space<vmem>>, vector<8x8xf32>,
    } else {
    }
    return
  }
  func.func @transform_0(%arg0: i32, %arg1: i32, %arg2: i32) -> (i32, i32) {
    %c0_i32 = arith.constant 0 : i32
    return %arg0, %arg2 : i32, i32
  }
  func.func @transform_1(%arg0: i32, %arg1: i32, %arg2: i32) -> (i32, i32) {
    %c0_i32 = arith.constant 0 : i32
    return %arg1, %arg2 : i32, i32
  }
  func.func @transform_2(%arg0: i32, %arg1: i32, %arg2: i32) -> (i32, i32) {
    %c0_i32 = arith.constant 0 : i32
    return %arg0, %arg1 : i32, i32
  }
}

</mosaic_0001>

<llo_original>
// kernel: tpu_custom_call.1
$region0: #{tpu_custom_call.1}
  #allocation0 [shape = 'u32[]', space=smem, size = 0x4, offset = 0x4, fixed_abs, tag = 'smem constant byte address 0x4 - core index']
  #allocation1 [shape = 'u32[144,128]{1,0:T(1,128)}', space=vmem, size = 0x12000, scoped, tag = 'internal scratch']
  #allocation2 [shape = 'f32[8,8]{1,0:T(8,128)}', space=vmem, size = 0x1000, scoped, tag = 'scratch operand']
  #allocation3 [shape = 'f32[8,1]{1,0:T(8,128)}', space=vmem, size = 0x1000, scoped, tag = 'scratch operand']
  #allocation4 [shape = 'f32[1,8]{1,0:T(1,128)}', space=vmem, size = 0x200, scoped, tag = 'scratch operand']
  %s0 = inlined_call_operand.hbm [shape: f32[8,128], index: 0, kind: input, shape index: {}]
  %s1 = inlined_call_operand.hbm [shape: f32[8,128], index: 1, kind: input, shape index: {}]
  %s2 = inlined_call_operand.hbm [shape: f32[8,8], index: 2, kind: output, shape index: {}]
  %s3 = sld [smem:[#allocation0]]
  $region34: #{tpu_custom_call.1} parent=0
    _
  %s5 = ssub.s32 1, %s3
  %s6 = scalar_select 0, %s5, %s3
  $region1: #{tpu_custom_call.1} parent=0
    #allocation5 [shape = 'u8[4096]{0}', space=vmem, size = 0x1000, scoped, tag = 'input window, operand 0, single buffered']
    #allocation6 [shape = 's32[1]{0}', space=sflag, size = 0x4, scoped, tag = 'scoped memory for tpu_custom_call.1']
    #allocation7 [shape = 's32[1]{0}', space=sflag, size = 0x4, scoped, tag = 'scoped memory for tpu_custom_call.1']
    #allocation8 [shape = 'u8[4096]{0}', space=vmem, size = 0x1000, scoped, tag = 'input window, operand 1, single buffered']
    #allocation9 [shape = 's32[1]{0}', space=sflag, size = 0x4, scoped, tag = 'scoped memory for tpu_custom_call.1']
    #allocation10 [shape = 'u8[4096]{0}', space=vmem, size = 0x1000, scoped, tag = 'output window, operand 0, single buffered']
    %7 = vsyncpa [#allocation6], 0
    %8 = vsyncpa [#allocation9], 0
    %9 = vsyncpa [#allocation7], 0
    // Predicated region
    $region2: #{tpu_custom_call.1} parent=1 // pred_check
      _
    $region3: #{tpu_custom_call.1} parent=1 // pred_check_branch
      %11 = sbr.rel (0) target = $region5
    $region4: #{tpu_custom_call.1} parent=1 // pred_region
      %s13 = ssub.s32 128, 128
      %14 = vsyncadd [#allocation6], %s13
      %s16 = sshll.u32 [#allocation5], 4
      %s17 = int_to_ptr.vmem [resolvable:$true] %s16
      %19 = dma.hbm_to_vmem [thread:$0]  %s0, 128, %s17, [#allocation6]
    $region5: #{tpu_custom_call.1} parent=1 // pred_fallthru
      _
    // Predicated region
    $region6: #{tpu_custom_call.1} parent=1 // pred_check
      _
    $region7: #{tpu_custom_call.1} parent=1 // pred_check_branch
      %21 = sbr.rel (0) target = $region9
    $region8: #{tpu_custom_call.1} parent=1 // pred_region
      %s23 = ssub.s32 128, 128
      %24 = vsyncadd [#allocation9], %s23
      %s26 = sshll.u32 [#allocation8], 4
      %s27 = int_to_ptr.vmem [resolvable:$true] %s26
      %29 = dma.hbm_to_vmem [thread:$0]  %s1, 128, %s27, [#allocation9]
    $region9: #{tpu_custom_call.1} parent=1 // pred_fallthru
      _
    // Predicated region
    $region10: #{tpu_custom_call.1} parent=1 // pred_check
      _
    $region11: #{tpu_custom_call.1} parent=1 // pred_check_branch
      %31 = sbr.rel (0) target = $region13
    $region12: #{tpu_custom_call.1} parent=1 // pred_region
      %32 = dma.done [#allocation6], 128
    $region13: #{tpu_custom_call.1} parent=1 // pred_fallthru
      _
    // Predicated region
    $region14: #{tpu_custom_call.1} parent=1 // pred_check
      _
    $region15: #{tpu_custom_call.1} parent=1 // pred_check_branch
      %34 = sbr.rel (0) target = $region17
    $region16: #{tpu_custom_call.1} parent=1 // pred_region
      %35 = dma.done [#allocation9], 128
    $region17: #{tpu_custom_call.1} parent=1 // pred_fallthru
      _
    %p36 = scmp.eq.s32.totalorder 0, 0
    // Predicated region
    $region18: #{tpu_custom_call.1} parent=1 // pred_check
      %p37 = pneg %p36
    $region19: #{tpu_custom_call.1} parent=1 // pred_check_branch
      %39 = sbr.rel (%p37) target = $region21
    $region20: #{tpu_custom_call.1} parent=1 // pred_region
      %vm40 = vcmask 64512
      %41 = vst.msk [vmem:[#allocation2] sm:$0xff] %vm40, 0.0
      %vm42 = vcmask 7168
      %43 = vst.msk [vmem:[#allocation3] sm:$0xff] %vm42, 0.0
      %vm44 = vcmask 57344
      %45 = vst.msk [vmem:[#allocation4] sm:$0x1] %vm44, 0.0
    $region21: #{tpu_custom_call.1} parent=1 // pred_fallthru
      _
    %v46 = vld [vmem:[#allocation5] sm:$0xff]
    %v47 = vld [vmem:[#allocation8] sm:$0xff]
    %v48 = vld [vmem:[#allocation2] sm:$0xff]
    %49 = vmatprep.subr.mxu0 0.0
    %50 = vmatpush1.xpose.msra.mxu0 %v47
    %51 = vmatprep.subr.mxu0 0.0
    %52 = vmatpush1.xpose.msra.mxu0 0.0
    %53 = vmatprep.subr.mxu0 0.0
    %54 = vmatpush1.xpose.msra.mxu0 0.0
    %55 = vmatprep.subr.mxu0 0.0
    %56 = vmatpush1.xpose.msra.mxu0 0.0
    %57 = vmatprep.subr.mxu0 0.0
    %58 = vmatpush1.xpose.msra.mxu0 0.0
    %59 = vmatprep.subr.mxu0 0.0
    %60 = vmatpush1.xpose.msra.mxu0 0.0
    %61 = vmatprep.subr.mxu0 0.0
    %62 = vmatpush1.xpose.msra.mxu0 0.0
    %63 = vmatprep.subr.mxu0 0.0
    %64 = vmatpush1.xpose.msra.mxu0 0.0
    %65 = vmatprep.subr.mxu0 0.0
    %66 = vmatpush1.xpose.msra.mxu0 0.0
    %67 = vmatprep.subr.mxu0 0.0
    %68 = vmatpush1.xpose.msra.mxu0 0.0
    %69 = vmatprep.subr.mxu0 0.0
    %70 = vmatpush1.xpose.msra.mxu0 0.0
    %71 = vmatprep.subr.mxu0 0.0
    %72 = vmatpush1.xpose.msra.mxu0 0.0
    %73 = vmatprep.subr.mxu0 0.0
    %74 = vmatpush1.xpose.msra.mxu0 0.0
    %75 = vmatprep.subr.mxu0 0.0
    %76 = vmatpush1.xpose.msra.mxu0 0.0
    %77 = vmatprep.subr.mxu0 0.0
    %78 = vmatpush1.xpose.msra.mxu0 0.0
    %79 = vmatprep.subr.mxu0 0.0
    %80 = vmatpush1.xpose.msra.mxu0 0.0
    %81 = vmatprep.subr.mxu0 0.0
    %82 = vmatpush1.xpose.msra.mxu0 0.0
    %83 = vmatprep.subr.mxu0 0.0
    %84 = vmatpush1.xpose.msra.mxu0 0.0
    %85 = vmatprep.subr.mxu0 0.0
    %86 = vmatpush1.xpose.msra.mxu0 0.0
    %87 = vmatprep.subr.mxu0 0.0
    %88 = vmatpush1.xpose.msra.mxu0 0.0
    %89 = vmatprep.subr.mxu0 0.0
    %90 = vmatpush1.xpose.msra.mxu0 0.0
    %91 = vmatprep.subr.mxu0 0.0
    %92 = vmatpush1.xpose.msra.mxu0 0.0
    %93 = vmatprep.subr.mxu0 0.0
    %94 = vmatpush1.xpose.msra.mxu0 0.0
    %95 = vmatprep.subr.mxu0 0.0
    %96 = vmatpush1.xpose.msra.mxu0 0.0
    %97 = vmatprep.subr.mxu0 0.0
    %98 = vmatpush1.xpose.msra.mxu0 0.0
    %99 = vmatprep.subr.mxu0 0.0
    %100 = vmatpush1.xpose.msra.mxu0 0.0
    %101 = vmatprep.subr.mxu0 0.0
    %102 = vmatpush1.xpose.msra.mxu0 0.0
    %103 = vmatprep.subr.mxu0 0.0
    %104 = vmatpush1.xpose.msra.mxu0 0.0
    %105 = vmatprep.subr.mxu0 0.0
    %106 = vmatpush1.xpose.msra.mxu0 0.0
    %107 = vmatprep.subr.mxu0 0.0
    %108 = vmatpush1.xpose.msra.mxu0 0.0
    %109 = vmatprep.subr.mxu0 0.0
    %110 = vmatpush1.xpose.msra.mxu0 0.0
    %111 = vmatprep.subr.mxu0 0.0
    %112 = vmatpush1.xpose.msra.mxu0 0.0
    %113 = vmatprep.mubr.f32.mxu0 0.0
    %114 = vmatmul.mubr.f32.gmra.mrb[0].mxu0 %v46
    %v115 = vpop.f32.mrb[0].mxu0
    %v116 = vadd.f32 0.0, %v115
    %v117 = vpop.f32.mrb[0].mxu0
    %118 = vdwg.mxu0
    %v119 = vadd.f32 %v48, %v116
    %vm120 = vcmask 64512
    %121 = vst.msk [vmem:[#allocation2] sm:$0xff] %vm120, %v119
    %v122 = vld [vmem:[#allocation3] sm:$0xff]
    %v123 = vmul.f32 %v46, %v46
    %124 = vadd.xlane.f32.xlu0 %v123
    %v125 = vpop.xlane.xlu0 %124
    %v126 = vadd.f32 %v122, %v125
    %vm127 = vcmask 7168
    %128 = vst.msk [vmem:[#allocation3] sm:$0xff] %vm127, %v126
    %v129 = vld [vmem:[#allocation4] sm:$0x1]
    %v130 = vmul.f32 %v47, %v47
    %131 = vmatprep.subr.mxu0 0.0
    %132 = vmatpush1.xpose.msra.mxu0 %v130
    %133 = vmatprep.subr.mxu0 0.0
    %134 = vmatpush1.xpose.msra.mxu0 0.0
    %135 = vmatprep.subr.mxu0 0.0
    %136 = vmatpush1.xpose.msra.mxu0 0.0
    %137 = vmatprep.subr.mxu0 0.0
    %138 = vmatpush1.xpose.msra.mxu0 0.0
    %139 = vmatprep.subr.mxu0 0.0
    %140 = vmatpush1.xpose.msra.mxu0 0.0
    %141 = vmatprep.subr.mxu0 0.0
    %142 = vmatpush1.xpose.msra.mxu0 0.0
    %143 = vmatprep.subr.mxu0 0.0
    %144 = vmatpush1.xpose.msra.mxu0 0.0
    %145 = vmatprep.subr.mxu0 0.0
    %146 = vmatpush1.xpose.msra.mxu0 0.0
    %147 = vmatprep.subr.mxu0 0.0
    %148 = vmatpush1.xpose.msra.mxu0 0.0
    %149 = vmatprep.subr.mxu0 0.0
    %150 = vmatpush1.xpose.msra.mxu0 0.0
    %151 = vmatprep.subr.mxu0 0.0
    %152 = vmatpush1.xpose.msra.mxu0 0.0
    %153 = vmatprep.subr.mxu0 0.0
    %154 = vmatpush1.xpose.msra.mxu0 0.0
    %155 = vmatprep.subr.mxu0 0.0
    %156 = vmatpush1.xpose.msra.mxu0 0.0
    %157 = vmatprep.subr.mxu0 0.0
    %158 = vmatpush1.xpose.msra.mxu0 0.0
    %159 = vmatprep.subr.mxu0 0.0
    %160 = vmatpush1.xpose.msra.mxu0 0.0
    %161 = vmatprep.subr.mxu0 0.0
    %162 = vmatpush1.xpose.msra.mxu0 0.0
    %163 = vmatprep.subr.mxu0 0.0
    %164 = vmatpush1.xpose.msra.mxu0 0.0
    %165 = vmatprep.subr.mxu0 0.0
    %166 = vmatpush1.xpose.msra.mxu0 0.0
    %167 = vmatprep.subr.mxu0 0.0
    %168 = vmatpush1.xpose.msra.mxu0 0.0
    %169 = vmatprep.subr.mxu0 0.0
    %170 = vmatpush1.xpose.msra.mxu0 0.0
    %171 = vmatprep.subr.mxu0 0.0
    %172 = vmatpush1.xpose.msra.mxu0 0.0
    %173 = vmatprep.subr.mxu0 0.0
    %174 = vmatpush1.xpose.msra.mxu0 0.0
    %175 = vmatprep.subr.mxu0 0.0
    %176 = vmatpush1.xpose.msra.mxu0 0.0
    %177 = vmatprep.subr.mxu0 0.0
    %178 = vmatpush1.xpose.msra.mxu0 0.0
    %179 = vmatprep.subr.mxu0 0.0
    %180 = vmatpush1.xpose.msra.mxu0 0.0
    %181 = vmatprep.subr.mxu0 0.0
    %182 = vmatpush1.xpose.msra.mxu0 0.0
    %183 = vmatprep.subr.mxu0 0.0
    %184 = vmatpush1.xpose.msra.mxu0 0.0
    %185 = vmatprep.subr.mxu0 0.0
    %186 = vmatpush1.xpose.msra.mxu0 0.0
    %187 = vmatprep.subr.mxu0 0.0
    %188 = vmatpush1.xpose.msra.mxu0 0.0
    %189 = vmatprep.subr.mxu0 0.0
    %190 = vmatpush1.xpose.msra.mxu0 0.0
    %191 = vmatprep.subr.mxu0 0.0
    %192 = vmatpush1.xpose.msra.mxu0 0.0
    %193 = vmatprep.subr.mxu0 0.0
    %194 = vmatpush1.xpose.msra.mxu0 0.0
    %195 = vmatprep.mubr.f32.mxu0 0.0
    %196 = vmatmul.mubr.f32.gmra.mrb[0].mxu0 1.0
    %v197 = vpop.f32.mrb[0].mxu0
    %v198 = vadd.f32 0.0, %v197
    %v199 = vpop.f32.mrb[0].mxu0
    %200 = vdwg.mxu0
    %v201 = vadd.f32 %v129, %v198
    %vm202 = vcmask 57344
    %203 = vst.msk [vmem:[#allocation4] sm:$0x1] %vm202, %v201
    // Predicated region
    $region22: #{tpu_custom_call.1} parent=1 // pred_check
      %p204 = pneg %p36
    $region23: #{tpu_custom_call.1} parent=1 // pred_check_branch
      %206 = sbr.rel (%p204) target = $region25
    $region24: #{tpu_custom_call.1} parent=1 // pred_region
      %v207 = vld [vmem:[#allocation3] sm:$0xff]
      %v208 = vrsqrt.pop %v207
      %v209 = vmul.f32 %v207, %v208
      %vm210 = vcmp.eq.f32.partialorder %v207, inf
      %v211 = vsel %vm210, %v207, %v209
      %vm212 = vcmp.eq.f32.partialorder %v207, 0.0
      %v213 = vand.u32 %v207, 2147483648
      %v214 = vsel %vm212, %v213, %v211
      %v215 = vmax.f32 %v214, 1e-12
      %v216 = vld [vmem:[#allocation4] sm:$0x1]
      %v217 = vrsqrt.pop %v216
      %v218 = vmul.f32 %v216, %v217
      %vm219 = vcmp.eq.f32.partialorder %v216, inf
      %v220 = vsel %vm219, %v216, %v218
      %vm221 = vcmp.eq.f32.partialorder %v216, 0.0
      %v222 = vand.u32 %v216, 2147483648
      %v223 = vsel %vm221, %v222, %v220
      %v224 = vmax.f32 %v223, 1e-12
      %v225 = vld [vmem:[#allocation2] sm:$0xff]
      %227 = vset.pattern.permute.xlu0 0
      %228 = vperm.xlu0 %227, %v215
      %v229 = vpop.permute.xlu0 %228
      %v232 = vlaneseq
      %v233 = vshrl.u32 %v232, 7
      %v234 = vsub.s32 0, %v233
      %v235 = vrot.slane %v224, %v234
      %v237 = vmul.f32 %v229, %v235
      %v238 = vrcp.pop %v237
      %v239 = vmul.f32 %v225, %v238
      %240 = vst.msk [vmem:[#allocation10] sm:$0xff] %vm120, %v239
    $region25: #{tpu_custom_call.1} parent=1 // pred_fallthru
      _
    // Predicated region
    $region26: #{tpu_custom_call.1} parent=1 // pred_check
      _
    $region27: #{tpu_custom_call.1} parent=1 // pred_check_branch
      %242 = sbr.rel (0) target = $region29
    $region28: #{tpu_custom_call.1} parent=1 // pred_region
      %s244 = ssub.s32 128, 128
      %245 = vsyncadd [#allocation7], %s244
      %s247 = sshll.u32 [#allocation10], 4
      %s248 = int_to_ptr.vmem [resolvable:$true] %s247
      %250 = dma.vmem_to_hbm [thread:$0]  %s248, 128, %s2, [#allocation7]
    $region29: #{tpu_custom_call.1} parent=1 // pred_fallthru
      _
    // Predicated region
    $region30: #{tpu_custom_call.1} parent=1 // pred_check
      _
    $region31: #{tpu_custom_call.1} parent=1 // pred_check_branch
      %252 = sbr.rel (0) target = $region33
    $region32: #{tpu_custom_call.1} parent=1 // pred_region
      %253 = dma.done [#allocation7], 128
    $region33: #{tpu_custom_call.1} parent=1 // pred_fallthru
      _
    %254 = vsyncpa [#allocation6], 1
    %255 = vsyncpa [#allocation9], 1
    %256 = vsyncpa [#allocation7], 1

</llo_original>
